<compile_context>
chip_gen: v5e
topology: v5e:2x2
jax: 0.10.0
libtpu: 0.0.40
codegen_flags: <defaults>
</compile_context>

<pallas_src>
import functools

import jax
import jax.numpy as jnp
from jax import lax
from jax.experimental import pallas as pl
from jax.experimental.pallas import tpu as pltpu


def _round_up(x: int, m: int) -> int:
    return ((x + m - 1) // m) * m


def _pick_time_tile(lout: int) -> int:
    """Largest lane-dense (multiple-of-128) tile that evenly divides Lout;
    fall back to the full Lout (full-extent block) for short streams."""
    for cand in (2048, 1024, 512, 256, 128):
        if lout >= cand and lout % cand == 0:
            return cand
    return lout


def _pick_cout_tile(cout: int) -> int:
    """MXU-M-aligned Cout tile; bounds weight/output VMEM for wide layers."""
    for cand in (256, 128):
        if cout > cand and cout % cand == 0:
            return cand
    return cout


def _pick_batch_tile(batch: int, n_tj: int, tl: int, in_bytes_per_batch: int) -> int:
    """Fold several batch rows into one grid step for short streams so the
    per-step overhead is amortized; bounded by a small VMEM budget."""
    if n_tj > 1:
        return 1
    cap_work = max(1, 256 // max(tl, 1))
    cap_mem = max(1, (8 << 20) // max(in_bytes_per_batch, 1))
    cap = max(1, min(batch, cap_work, cap_mem, 16))
    for bb in range(cap, 0, -1):
        if batch % bb == 0:
            return bb
    return 1


def stream_conv1d_forward(x, cache, weight, bias, *, stride=1, dilation=1,
                          groups=1, mxu_dtype="auto"):
    """Pallas TPU implementation of StreamConv1d.forward.

    x:      [B, Cin, T]
    cache:  [B, Cin, T_cache]
    weight: [Cout, Cin//groups, K]   (PyTorch Conv1d layout)
    bias:   [Cout]
    mxu_dtype: matmul-operand dtype.  "auto" -> bfloat16 when the input is
        float32 (v6e/v7x recommendation; cast happens in-kernel so the HBM
        input, out_cache and accumulation stay f32), None -> input dtype
        (bit-exact f32 path), or an explicit dtype.

    Returns (out [B, Cout, Lout], out_cache = inp[..., 1:]).
    """
    # ---- glue: the concat is the only wrapper-side HBM copy (it IS the conv
    # input).  out_cache is produced inside the kernel for stride==1.
    inp = jnp.concatenate([cache, x], axis=-1)               # [B, Cin, Lin]

    B, Cin, Lin = inp.shape
    Cout, Cig, K = weight.shape
    assert Cin % groups == 0 and Cout % groups == 0 and Cin == Cig * groups
    Cog = Cout // groups
    Lout = (Lin - dilation * (K - 1) - 1) // stride + 1
    assert Lout >= 1, "input (cache + x) shorter than the receptive field"

    out_dtype = x.dtype
    in_item = jnp.dtype(inp.dtype).itemsize

    if isinstance(mxu_dtype, str) and mxu_dtype == "auto":
        mxu_dt = jnp.bfloat16 if inp.dtype == jnp.float32 else inp.dtype
    elif mxu_dtype is None:
        mxu_dt = inp.dtype
    else:
        mxu_dt = jnp.dtype(mxu_dtype)
    mxu_item = jnp.dtype(mxu_dt).itemsize

    # Channels rounded up to the matmul-dtype sublane tile so the per-tap rows
    # in the stacking scratch start on (8,128)/(16,128) tile boundaries.
    sub = 8 if mxu_item >= 4 else (16 if mxu_item == 2 else 32)
    Cin_p = _round_up(Cin, sub)

    # ---- tiling ----
    TL = _pick_time_tile(Lout)
    n_tj = Lout // TL
    TCout = _pick_cout_tile(Cout)
    n_co = Cout // TCout

    # ---- stride phases: decimate in the wrapper so the kernel only issues
    # unit-stride lane loads (lane-strided loads are XLU-heavy / may not lower).
    if stride == 1:
        n_phase, Lph = 1, Lin
        phases = inp.reshape(B, 1, Cin, Lin)                 # reshape, no copy
    else:
        n_phase = stride
        Lph = -(-Lin // stride)
        ph_list = []
        for p in range(stride):
            ph = inp[..., p::stride]
            pad = Lph - ph.shape[-1]
            if pad:
                ph = jnp.pad(ph, ((0, 0), (0, 0), (0, pad)))
            ph_list.append(ph)
        phases = jnp.stack(ph_list, axis=1)                  # [B, stride, Cin, Lph]
    tap_phase = [(k * dilation) % stride for k in range(K)]
    tap_off = [(k * dilation) // stride for k in range(K)]

    Bb = _pick_batch_tile(B, n_tj, TL, n_phase * Cin * Lph * in_item * 2)
    n_bi = B // Bb

    # out_cache fused into the kernel only when its exact source (un-decimated,
    # un-cast input block) is resident there.
    fuse_cache = (stride == 1) and (Lin > 1)
    # TODO(synk): fuse the out_cache copy for stride > 1 too (needs a lane
    # interleave of the phase arrays or a second un-decimated input block).

    # ---- block-diagonal folded weight: column index = k*Cin_p + channel.
    # Zeros outside each group's channel block and in the alignment padding, so
    # ONE matmul per batch row covers all groups (groups-x redundant MACs are
    # cheaper than `groups` sub-MXU-tile matmul latencies for small groups).
    # TODO(synk): depthwise / very large `groups` would be better served by a
    # VPU broadcast-MAC path than by this block-diagonal matmul.
    wt = jnp.transpose(weight, (0, 2, 1)).astype(jnp.float32)   # (Cout, K, Cig)
    if groups == 1 and Cin_p == Cin:
        w_bd = wt.reshape(Cout, K * Cin)
    else:
        rows = []
        for g in range(groups):
            blk = wt[g * Cog:(g + 1) * Cog]                      # (Cog, K, Cig)
            left = jnp.zeros((Cog, K, g * Cig), jnp.float32)
            right = jnp.zeros((Cog, K, Cin_p - (g + 1) * Cig), jnp.float32)
            rows.append(jnp.concatenate([left, blk, right], axis=2))
        w_bd = jnp.concatenate(rows, axis=0).reshape(Cout, K * Cin_p)
    w_bd = w_bd.astype(mxu_dt)
    bias2d = bias.astype(jnp.float32).reshape(Cout, 1)

    # ---- kernel ----
    def kernel(*refs):
        if fuse_cache:
            phases_ref, w_ref, b_ref, out_ref, cache_ref, x_scr = refs
        else:
            phases_ref, w_ref, b_ref, out_ref, x_scr = refs
            cache_ref = None

        # Zero the alignment-pad rows each step: their weight columns are zero,
        # but 0 * uninitialized-VMEM could still be NaN/Inf.
        if Cin_p != Cin:
            for k in range(K):
                x_scr[pl.ds(k * Cin_p + Cin, Cin_p - Cin), :] = jnp.zeros(
                    (Cin_p - Cin, TL), x_scr.dtype)

        if n_tj == 1:
            t0 = 0                               # fully static offsets for streams
        else:
            t0 = pl.multiple_of(pl.program_id(2) * TL, TL)

        w = w_ref[...]                           # (TCout, K*Cin_p), hoisted
        bvec = b_ref[...]                        # (TCout, 1)
        for b in range(Bb):                      # static unroll (batch folding)
            for k in range(K):                   # static unroll over taps
                slab = phases_ref[b, tap_phase[k], :, pl.ds(t0 + tap_off[k], TL)]
                x_scr[pl.ds(k * Cin_p, Cin), :] = slab.astype(x_scr.dtype)
            acc = jnp.dot(w, x_scr[...], preferred_element_type=jnp.float32)
            out_ref[b, :, :] = (acc + bvec).astype(out_ref.dtype)

        if fuse_cache:
            # Straight copy of the already-resident input block; written on the
            # first (cout, time) visit, flushed once per batch block.
            @pl.when(jnp.logical_and(pl.program_id(1) == 0, pl.program_id(2) == 0))
            def _():
                for b in range(Bb):
                    cache_ref[b, :, :] = phases_ref[b, 0, :, pl.ds(1, Lin - 1)]

    # ---- specs ----
    in_specs = [
        # Full-sequence, grid-invariant input block: DMA'd once per batch block.
        # TODO(synk): switch to a haloed time-windowed block for very long
        # sequences / large Cin (full-Lin double buffering can exceed VMEM).
        pl.BlockSpec((Bb, n_phase, Cin, Lph), lambda bi, co, j: (bi, 0, 0, 0)),
        pl.BlockSpec((TCout, K * Cin_p), lambda bi, co, j: (co, 0)),
        pl.BlockSpec((TCout, 1), lambda bi, co, j: (co, 0)),
    ]
    out_specs = [pl.BlockSpec((Bb, TCout, TL), lambda bi, co, j: (bi, co, j))]
    out_shapes = [jax.ShapeDtypeStruct((B, Cout, Lout), out_dtype)]
    if fuse_cache:
        out_specs.append(
            pl.BlockSpec((Bb, Cin, Lin - 1), lambda bi, co, j: (bi, 0, 0)))
        out_shapes.append(jax.ShapeDtypeStruct((B, Cin, Lin - 1), inp.dtype))

    # ---- explicit VMEM budget (double-buffered blocks + scratch + headroom).
    out_item = jnp.dtype(out_dtype).itemsize
    blk_bytes = (Bb * n_phase * Cin * Lph * in_item
                 + TCout * K * Cin_p * mxu_item
                 + TCout * 4
                 + Bb * TCout * TL * out_item)
    if fuse_cache:
        blk_bytes += Bb * Cin * (Lin - 1) * in_item
    scratch_bytes = K * Cin_p * TL * mxu_item
    vmem_limit = int(min(2 * blk_bytes + scratch_bytes + (4 << 20), 128 << 20))

    flops = int(2 * B * Lout * Cout * K * Cin_p)
    bytes_accessed = int(B * n_phase * Cin * Lph * in_item
                         + Cout * K * Cin_p * mxu_item + Cout * 4
                         + B * Cout * Lout * out_item
                         + (B * Cin * (Lin - 1) * in_item if fuse_cache else 0))

    res = pl.pallas_call(
        kernel,
        out_shape=tuple(out_shapes),
        grid_spec=pltpu.PrefetchScalarGridSpec(
            num_scalar_prefetch=0,
            grid=(n_bi, n_co, n_tj),                 # time axis innermost
            in_specs=in_specs,
            out_specs=tuple(out_specs),
            scratch_shapes=[pltpu.VMEM((K * Cin_p, TL), mxu_dt)],
        ),
        compiler_params=pltpu.CompilerParams(
            # out_cache is revisited across the cout/time axes -> keep those
            # "arbitrary"; the batch axis carries the megacore parallelism.
            dimension_semantics=("parallel", "arbitrary", "arbitrary"),
            vmem_limit_bytes=vmem_limit),
        cost_estimate=pl.CostEstimate(
            flops=flops, transcendentals=0, bytes_accessed=bytes_accessed),
    )(phases, w_bd, bias2d)

    out = res[0]
    out_cache = res[1] if fuse_cache else inp[..., 1:]
    return out, out_cache


def _reference_conv1d(inp, weight, bias, stride, dilation, groups):
    """Plain-JAX reference (lax.conv_general_dilated) for correctness check."""
    out = lax.conv_general_dilated(
        inp, weight,
        window_strides=(stride,),
        padding="VALID",
        rhs_dilation=(dilation,),
        dimension_numbers=("NCH", "OIH", "NCH"),
        feature_group_count=groups,
    )
    return out + bias[None, :, None]


def _run_case(name, *, B, Cin, Cout, K, stride, dilation, groups, T,
              mxu_dtype, atol, rtol, seed):
    key = jax.random.PRNGKey(seed)
    kx, kc, kw, kb = jax.random.split(key, 4)
    Tc = dilation * (K - 1)                    # causal streaming cache length
    x = jax.random.normal(kx, (B, Cin, T), dtype=jnp.float32)
    cache = jax.random.normal(kc, (B, Cin, Tc), dtype=jnp.float32)
    fan_in = (Cin // groups) * K
    bound = 1.0 / (fan_in ** 0.5)
    weight = jax.random.uniform(kw, (Cout, Cin // groups, K),
                                minval=-bound, maxval=bound, dtype=jnp.float32)
    bias = jax.random.uniform(kb, (Cout,), minval=-bound, maxval=bound,
                              dtype=jnp.float32)

    fwd = jax.jit(functools.partial(stream_conv1d_forward, stride=stride,
                                    dilation=dilation, groups=groups,
                                    mxu_dtype=mxu_dtype))
    out, out_cache = fwd(x, cache, weight, bias)
    jax.block_until_ready((out, out_cache))

    inp = jnp.concatenate([cache, x], axis=-1)
    out_expected = _reference_conv1d(inp, weight, bias, stride, dilation, groups)
    cache_expected = inp[..., 1:]
    assert out.shape == out_expected.shape, (name, out.shape, out_expected.shape)
    assert out_cache.shape == cache_expected.shape, (name, out_cache.shape)
    assert jnp.allclose(out, out_expected, atol=atol, rtol=rtol), name
    assert jnp.allclose(out_cache, cache_expected), name   # cache copy is exact


if __name__ == "__main__":
    # Base module config (stride=1, padding=0, dilation=1, groups=1, bias=True),
    # small streaming shapes: batch=2, channels=4, T=16, cache=dilation*(K-1).
    base = dict(B=2, Cin=4, Cout=8, K=3, stride=1, dilation=1, groups=1, T=16)

    # Exact f32 MXU-operand path.
    _run_case("base_f32", **base, mxu_dtype=None, atol=1e-4, rtol=1e-4, seed=0)
    # Default path: bf16 MXU operands (v6e/v7x recommendation), f32 accumulate.
    _run_case("base_bf16", **base, mxu_dtype="auto", atol=5e-2, rtol=5e-2, seed=0)
    # Grouped conv exercises the block-diagonal folded weight.
    _run_case("groups2", B=2, Cin=4, Cout=8, K=3, stride=1, dilation=1,
              groups=2, T=16, mxu_dtype=None, atol=1e-4, rtol=1e-4, seed=1)
    # Strided + dilated conv exercises the wrapper-side phase decimation.
    _run_case("stride2_dil2", B=2, Cin=4, Cout=6, K=3, stride=2, dilation=2,
              groups=1, T=16, mxu_dtype=None, atol=1e-4, rtol=1e-4, seed=2)

    print("KERNEL_OK")
</pallas_src>

<mosaic_0001>
module attributes {stable_mosaic.version = 11 : i64} {
  func.func @kernel(%arg0: i32, %arg1: i32, %arg2: i32, %arg3: memref<2x1x4x18xf32, #tpu.memory_space<vmem>>, %arg4: memref<8x24xf32, #tpu.memory_space<vmem>>, %arg5: memref<8x1xf32, #tpu.memory_space<vmem>>, %arg6: memref<2x8x16xf32, #tpu.memory_space<vmem>>, %arg7: memref<2x4x17xf32, #tpu.memory_space<vmem>>, %arg8: memref<24x16xf32, #tpu.memory_space<vmem>>) attributes {dimension_semantics = [#tpu.dimension_semantics<parallel>, #tpu.dimension_semantics<arbitrary>, #tpu.dimension_semantics<arbitrary>], iteration_bounds = array<i64: 1, 1, 1>, scalar_prefetch = 0 : i64, scratch_operands = 1 : i64, tpu.core_type = #tpu.core_type<tc>, window_params = [{transform_indices = @transform_0, window_bounds = array<i64: 2, 1, 4, 18>}, {transform_indices = @transform_1, window_bounds = array<i64: 8, 24>}, {transform_indices = @transform_2, window_bounds = array<i64: 8, 1>}, {transform_indices = @transform_3, window_bounds = array<i64: 2, 8, 16>}, {transform_indices = @transform_4, window_bounds = array<i64: 2, 4, 17>}]} {
    %cst = arith.constant 0.000000e+00 : f32
    %0 = vector.broadcast %cst : f32 to vector<4x16xf32>
    %c4 = arith.constant 4 : index
    %c0 = arith.constant 0 : index
    %1 = vector.load %arg8[%c4, %c0] : memref<24x16xf32, #tpu.memory_space<vmem>>, vector<4x16xf32>
    tpu.vector_store %arg8[%c4, %c0], %0 {strides = array<i32>} : memref<24x16xf32, #tpu.memory_space<vmem>>, vector<4x16xf32>,
    %cst_0 = arith.constant 0.000000e+00 : f32
    %2 = vector.broadcast %cst_0 : f32 to vector<4x16xf32>
    %c12 = arith.constant 12 : index
    %c0_1 = arith.constant 0 : index
    %3 = vector.load %arg8[%c12, %c0_1] : memref<24x16xf32, #tpu.memory_space<vmem>>, vector<4x16xf32>
    tpu.vector_store %arg8[%c12, %c0_1], %2 {strides = array<i32>} : memref<24x16xf32, #tpu.memory_space<vmem>>, vector<4x16xf32>,
    %cst_2 = arith.constant 0.000000e+00 : f32
    %4 = vector.broadcast %cst_2 : f32 to vector<4x16xf32>
    %c20 = arith.constant 20 : index
    %c0_3 = arith.constant 0 : index
    %5 = vector.load %arg8[%c20, %c0_3] : memref<24x16xf32, #tpu.memory_space<vmem>>, vector<4x16xf32>
    tpu.vector_store %arg8[%c20, %c0_3], %4 {strides = array<i32>} : memref<24x16xf32, #tpu.memory_space<vmem>>, vector<4x16xf32>,
    %c0_4 = arith.constant 0 : index
    %c0_5 = arith.constant 0 : index
    %6 = vector.load %arg4[%c0_4, %c0_5] : memref<8x24xf32, #tpu.memory_space<vmem>>, vector<8x24xf32>
    %c0_6 = arith.constant 0 : index
    %c0_7 = arith.constant 0 : index
    %7 = vector.load %arg5[%c0_6, %c0_7] : memref<8x1xf32, #tpu.memory_space<vmem>>, vector<8x1xf32>
    %c0_8 = arith.constant 0 : index
    %c0_9 = arith.constant 0 : index
    %c0_10 = arith.constant 0 : index
    %c0_11 = arith.constant 0 : index
    %8 = vector.load %arg3[%c0_8, %c0_9, %c0_10, %c0_11] : memref<2x1x4x18xf32, #tpu.memory_space<vmem>>, vector<1x1x4x16xf32>
    %9 = vector.shape_cast %8 : vector<1x1x4x16xf32> to vector<4x16xf32>
    %c0_12 = arith.constant 0 : index
    %c0_13 = arith.constant 0 : index
    %10 = vector.load %arg8[%c0_12, %c0_13] : memref<24x16xf32, #tpu.memory_space<vmem>>, vector<4x16xf32>
    tpu.vector_store %arg8[%c0_12, %c0_13], %9 {strides = array<i32>} : memref<24x16xf32, #tpu.memory_space<vmem>>, vector<4x16xf32>,
    %c0_14 = arith.constant 0 : index
    %c0_15 = arith.constant 0 : index
    %c0_16 = arith.constant 0 : index
    %c1 = arith.constant 1 : index
    %11 = vector.load %arg3[%c0_14, %c0_15, %c0_16, %c1] : memref<2x1x4x18xf32, #tpu.memory_space<vmem>>, vector<1x1x4x16xf32>
    %12 = vector.shape_cast %11 : vector<1x1x4x16xf32> to vector<4x16xf32>
    %c8 = arith.constant 8 : index
    %c0_17 = arith.constant 0 : index
    %13 = vector.load %arg8[%c8, %c0_17] : memref<24x16xf32, #tpu.memory_space<vmem>>, vector<4x16xf32>
    tpu.vector_store %arg8[%c8, %c0_17], %12 {strides = array<i32>} : memref<24x16xf32, #tpu.memory_space<vmem>>, vector<4x16xf32>,
    %c0_18 = arith.constant 0 : index
    %c0_19 = arith.constant 0 : index
    %c0_20 = arith.constant 0 : index
    %c2 = arith.constant 2 : index
    %14 = vector.load %arg3[%c0_18, %c0_19, %c0_20, %c2] : memref<2x1x4x18xf32, #tpu.memory_space<vmem>>, vector<1x1x4x16xf32>
    %15 = vector.shape_cast %14 : vector<1x1x4x16xf32> to vector<4x16xf32>
    %c16 = arith.constant 16 : index
    %c0_21 = arith.constant 0 : index
    %16 = vector.load %arg8[%c16, %c0_21] : memref<24x16xf32, #tpu.memory_space<vmem>>, vector<4x16xf32>
    tpu.vector_store %arg8[%c16, %c0_21], %15 {strides = array<i32>} : memref<24x16xf32, #tpu.memory_space<vmem>>, vector<4x16xf32>,
    %c0_22 = arith.constant 0 : index
    %c0_23 = arith.constant 0 : index
    %17 = vector.load %arg8[%c0_22, %c0_23] : memref<24x16xf32, #tpu.memory_space<vmem>>, vector<24x16xf32>
    %cst_24 = arith.constant dense<0.000000e+00> : vector<8x16xf32>
    %18 = tpu.matmul %6, %17, %cst_24 {dimension_numbers = #tpu.dot_dimension_numbers<[1], [0], [0], [1], [0, 0, 1, 1], [], []>} : vector<8x24xf32>, vector<24x16xf32>, vector<8x16xf32> -> vector<8x16xf32>
    %19 = vector.broadcast %7 : vector<8x1xf32> to vector<8x16xf32>
    %20 = arith.addf %18, %19 : vector<8x16xf32>
    %c0_25 = arith.constant 0 : index
    %c0_26 = arith.constant 0 : index
    %c0_27 = arith.constant 0 : index
    %21 = vector.load %arg6[%c0_25, %c0_26, %c0_27] : memref<2x8x16xf32, #tpu.memory_space<vmem>>, vector<1x8x16xf32>
    %22 = vector.shape_cast %21 : vector<1x8x16xf32> to vector<8x16xf32>
    %23 = vector.shape_cast %20 : vector<8x16xf32> to vector<1x8x16xf32>
    tpu.vector_store %arg6[%c0_25, %c0_26, %c0_27], %23 {strides = array<i32>} : memref<2x8x16xf32, #tpu.memory_space<vmem>>, vector<1x8x16xf32>,
    %c1_28 = arith.constant 1 : index
    %c0_29 = arith.constant 0 : index
    %c0_30 = arith.constant 0 : index
    %c0_31 = arith.constant 0 : index
    %24 = vector.load %arg3[%c1_28, %c0_29, %c0_30, %c0_31] : memref<2x1x4x18xf32, #tpu.memory_space<vmem>>, vector<1x1x4x16xf32>
    %25 = vector.shape_cast %24 : vector<1x1x4x16xf32> to vector<4x16xf32>
    %c0_32 = arith.constant 0 : index
    %c0_33 = arith.constant 0 : index
    %26 = vector.load %arg8[%c0_32, %c0_33] : memref<24x16xf32, #tpu.memory_space<vmem>>, vector<4x16xf32>
    tpu.vector_store %arg8[%c0_32, %c0_33], %25 {strides = array<i32>} : memref<24x16xf32, #tpu.memory_space<vmem>>, vector<4x16xf32>,
    %c1_34 = arith.constant 1 : index
    %c0_35 = arith.constant 0 : index
    %c0_36 = arith.constant 0 : index
    %c1_37 = arith.constant 1 : index
    %27 = vector.load %arg3[%c1_34, %c0_35, %c0_36, %c1_37] : memref<2x1x4x18xf32, #tpu.memory_space<vmem>>, vector<1x1x4x16xf32>
    %28 = vector.shape_cast %27 : vector<1x1x4x16xf32> to vector<4x16xf32>
    %c8_38 = arith.constant 8 : index
    %c0_39 = arith.constant 0 : index
    %29 = vector.load %arg8[%c8_38, %c0_39] : memref<24x16xf32, #tpu.memory_space<vmem>>, vector<4x16xf32>
    tpu.vector_store %arg8[%c8_38, %c0_39], %28 {strides = array<i32>} : memref<24x16xf32, #tpu.memory_space<vmem>>, vector<4x16xf32>,
    %c1_40 = arith.constant 1 : index
    %c0_41 = arith.constant 0 : index
    %c0_42 = arith.constant 0 : index
    %c2_43 = arith.constant 2 : index
    %30 = vector.load %arg3[%c1_40, %c0_41, %c0_42, %c2_43] : memref<2x1x4x18xf32, #tpu.memory_space<vmem>>, vector<1x1x4x16xf32>
    %31 = vector.shape_cast %30 : vector<1x1x4x16xf32> to vector<4x16xf32>
    %c16_44 = arith.constant 16 : index
    %c0_45 = arith.constant 0 : index
    %32 = vector.load %arg8[%c16_44, %c0_45] : memref<24x16xf32, #tpu.memory_space<vmem>>, vector<4x16xf32>
    tpu.vector_store %arg8[%c16_44, %c0_45], %31 {strides = array<i32>} : memref<24x16xf32, #tpu.memory_space<vmem>>, vector<4x16xf32>,
    %c0_46 = arith.constant 0 : index
    %c0_47 = arith.constant 0 : index
    %33 = vector.load %arg8[%c0_46, %c0_47] : memref<24x16xf32, #tpu.memory_space<vmem>>, vector<24x16xf32>
    %cst_48 = arith.constant dense<0.000000e+00> : vector<8x16xf32>
    %34 = tpu.matmul %6, %33, %cst_48 {dimension_numbers = #tpu.dot_dimension_numbers<[1], [0], [0], [1], [0, 0, 1, 1], [], []>} : vector<8x24xf32>, vector<24x16xf32>, vector<8x16xf32> -> vector<8x16xf32>
    %35 = vector.broadcast %7 : vector<8x1xf32> to vector<8x16xf32>
    %36 = arith.addf %34, %35 : vector<8x16xf32>
    %c1_49 = arith.constant 1 : index
    %c0_50 = arith.constant 0 : index
    %c0_51 = arith.constant 0 : index
    %37 = vector.load %arg6[%c1_49, %c0_50, %c0_51] : memref<2x8x16xf32, #tpu.memory_space<vmem>>, vector<1x8x16xf32>
    %38 = vector.shape_cast %37 : vector<1x8x16xf32> to vector<8x16xf32>
    %39 = vector.shape_cast %36 : vector<8x16xf32> to vector<1x8x16xf32>
    tpu.vector_store %arg6[%c1_49, %c0_50, %c0_51], %39 {strides = array<i32>} : memref<2x8x16xf32, #tpu.memory_space<vmem>>, vector<1x8x16xf32>,
    %c0_i32 = arith.constant 0 : i32
    %40 = arith.cmpi eq, %arg1, %c0_i32 : i32
    %c0_i32_52 = arith.constant 0 : i32
    %41 = arith.cmpi eq, %arg2, %c0_i32_52 : i32
    %42 = arith.andi %40, %41 : i1
    %43 = arith.extui %42 : i1 to i32
    %c0_i32_53 = arith.constant 0 : i32
    %44 = arith.cmpi ne, %43, %c0_i32_53 : i32
    scf.if %44 {
      %c0_54 = arith.constant 0 : index
      %c0_55 = arith.constant 0 : index
      %c0_56 = arith.constant 0 : index
      %c1_57 = arith.constant 1 : index
      %45 = vector.load %arg3[%c0_54, %c0_55, %c0_56, %c1_57] : memref<2x1x4x18xf32, #tpu.memory_space<vmem>>, vector<1x1x4x17xf32>
      %46 = vector.shape_cast %45 : vector<1x1x4x17xf32> to vector<4x17xf32>
      %c0_58 = arith.constant 0 : index
      %c0_59 = arith.constant 0 : index
      %c0_60 = arith.constant 0 : index
      %47 = vector.load %arg7[%c0_58, %c0_59, %c0_60] : memref<2x4x17xf32, #tpu.memory_space<vmem>>, vector<1x4x17xf32>
      %48 = vector.shape_cast %47 : vector<1x4x17xf32> to vector<4x17xf32>
      %49 = vector.shape_cast %46 : vector<4x17xf32> to vector<1x4x17xf32>
      tpu.vector_store %arg7[%c0_58, %c0_59, %c0_60], %49 {strides = array<i32>} : memref<2x4x17xf32, #tpu.memory_space<vmem>>, vector<1x4x17xf32>,
      %c1_61 = arith.constant 1 : index
      %c0_62 = arith.constant 0 : index
      %c0_63 = arith.constant 0 : index
      %c1_64 = arith.constant 1 : index
      %50 = vector.load %arg3[%c1_61, %c0_62, %c0_63, %c1_64] : memref<2x1x4x18xf32, #tpu.memory_space<vmem>>, vector<1x1x4x17xf32>
      %51 = vector.shape_cast %50 : vector<1x1x4x17xf32> to vector<4x17xf32>
      %c1_65 = arith.constant 1 : index
      %c0_66 = arith.constant 0 : index
      %c0_67 = arith.constant 0 : index
      %52 = vector.load %arg7[%c1_65, %c0_66, %c0_67] : memref<2x4x17xf32, #tpu.memory_space<vmem>>, vector<1x4x17xf32>
      %53 = vector.shape_cast %52 : vector<1x4x17xf32> to vector<4x17xf32>
      %54 = vector.shape_cast %51 : vector<4x17xf32> to vector<1x4x17xf32>
      tpu.vector_store %arg7[%c1_65, %c0_66, %c0_67], %54 {strides = array<i32>} : memref<2x4x17xf32, #tpu.memory_space<vmem>>, vector<1x4x17xf32>,
    } else {
    }
    return
  }
  func.func @transform_0(%arg0: i32, %arg1: i32, %arg2: i32) -> (i32, i32, i32, i32) {
    %c0_i32 = arith.constant 0 : i32
    %c0_i32_0 = arith.constant 0 : i32
    %c0_i32_1 = arith.constant 0 : i32
    %c0_i32_2 = arith.constant 0 : i32
    return %arg0, %c0_i32, %c0_i32_0, %c0_i32_1 : i32, i32, i32, i32
  }
  func.func @transform_1(%arg0: i32, %arg1: i32, %arg2: i32) -> (i32, i32) {
    %c0_i32 = arith.constant 0 : i32
    %c0_i32_0 = arith.constant 0 : i32
    return %arg1, %c0_i32 : i32, i32
  }
  func.func @transform_2(%arg0: i32, %arg1: i32, %arg2: i32) -> (i32, i32) {
    %c0_i32 = arith.constant 0 : i32
    %c0_i32_0 = arith.constant 0 : i32
    return %arg1, %c0_i32 : i32, i32
  }
  func.func @transform_3(%arg0: i32, %arg1: i32, %arg2: i32) -> (i32, i32, i32) {
    %c0_i32 = arith.constant 0 : i32
    return %arg0, %arg1, %arg2 : i32, i32, i32
  }
  func.func @transform_4(%arg0: i32, %arg1: i32, %arg2: i32) -> (i32, i32, i32) {
    %c0_i32 = arith.constant 0 : i32
    %c0_i32_0 = arith.constant 0 : i32
    %c0_i32_1 = arith.constant 0 : i32
    return %arg0, %c0_i32, %c0_i32_0 : i32, i32, i32
  }
}

</mosaic_0001>

<llo_original>
// kernel: stream_conv1d_forward.1
$region0: #{stream_conv1d_forward.1}
  #allocation0 [shape = 'u32[]', space=smem, size = 0x4, offset = 0x4, fixed_abs, tag = 'smem constant byte address 0x4 - core index']
  #allocation1 [shape = 'u32[72,128]{1,0:T(1,128)}', space=vmem, size = 0x9000, scoped, tag = 'internal scratch']
  #allocation2 [shape = 'f32[24,16]{1,0:T(8,128)}', space=vmem, size = 0x3000, scoped, tag = 'scratch operand']
  %s0 = inlined_call_operand.vmem [shape: f32[2,1,4,18], index: 0, kind: input, shape index: {}]
  %s1 = inlined_call_operand.vmem [shape: f32[8,24], index: 1, kind: input, shape index: {}]
  %s2 = inlined_call_operand.vmem [shape: f32[8,1], index: 2, kind: input, shape index: {}]
  %s3 = inlined_call_operand.hbm [shape: f32[2,8,16], index: 3, kind: output, shape index: {0}]
  %s4 = inlined_call_operand.hbm [shape: f32[2,4,17], index: 4, kind: output, shape index: {1}]
  %5 = xla_tuple %s3, %s4
  %s6 = sld [smem:[#allocation0]]
  $region34: #{stream_conv1d_forward.1} parent=0
    _
  %s8 = ssub.s32 1, %s6
  %s9 = scalar_select 0, %s8, %s6
  $region1: #{stream_conv1d_forward.1} parent=0
    #allocation3 [shape = 'u8[8192]{0}', space=vmem, size = 0x2000, scoped, tag = 'output window, operand 0, single buffered']
    #allocation4 [shape = 's32[1]{0}', space=sflag, size = 0x4, scoped, tag = 'scoped memory for stream_conv1d_forward.1']
    #allocation5 [shape = 'u8[4096]{0}', space=vmem, size = 0x1000, scoped, tag = 'output window, operand 1, single buffered']
    #allocation6 [shape = 's32[1]{0}', space=sflag, size = 0x4, scoped, tag = 'scoped memory for stream_conv1d_forward.1']
    %10 = vsyncpa [#allocation4], 0
    %11 = vsyncpa [#allocation6], 0
    // Predicated region
    $region2: #{stream_conv1d_forward.1} parent=1 // pred_check
      _
    $region3: #{stream_conv1d_forward.1} parent=1 // pred_check_branch
      %13 = sbr.rel (0) target = $region5
    $region4: #{stream_conv1d_forward.1} parent=1 // pred_region
      _
    $region5: #{stream_conv1d_forward.1} parent=1 // pred_fallthru
      _
    // Predicated region
    $region6: #{stream_conv1d_forward.1} parent=1 // pred_check
      _
    $region7: #{stream_conv1d_forward.1} parent=1 // pred_check_branch
      %15 = sbr.rel (0) target = $region9
    $region8: #{stream_conv1d_forward.1} parent=1 // pred_region
      _
    $region9: #{stream_conv1d_forward.1} parent=1 // pred_fallthru
      _
    // Predicated region
    $region10: #{stream_conv1d_forward.1} parent=1 // pred_check
      _
    $region11: #{stream_conv1d_forward.1} parent=1 // pred_check_branch
      %17 = sbr.rel (0) target = $region13
    $region12: #{stream_conv1d_forward.1} parent=1 // pred_region
      _
    $region13: #{stream_conv1d_forward.1} parent=1 // pred_fallthru
      _
    %vm18 = vcmask 125952
    %19 = vst.msk [vmem:[#allocation2 + $0x4] sm:$0xf] %vm18, 0.0
    %20 = vst.msk [vmem:[#allocation2 + $0xc] sm:$0xf] %vm18, 0.0
    %21 = vst.msk [vmem:[#allocation2 + $0x14] sm:$0xf] %vm18, 0.0
    %v22 = vld [vmem:[%s1] sm:$0xff]
    %v23 = vld [vmem:[%s2] sm:$0xff]
    %v24 = vld [vmem:[%s0] sm:$0xf]
    %25 = vst.msk [vmem:[#allocation2] sm:$0xf] %vm18, %v24
    %v26 = vld [vmem:[%s0] sm:$0xf]
    %28 = vrot.lane.b32.xlu0 %v26, 127
    %v29 = vpop.permute.xlu0 %28
    %31 = vst.msk [vmem:[#allocation2 + $0x8] sm:$0xf] %vm18, %v29
    %v32 = vld [vmem:[%s0] sm:$0xf]
    %34 = vrot.lane.b32.xlu0 %v32, 126
    %v35 = vpop.permute.xlu0 %34
    %37 = vst.msk [vmem:[#allocation2 + $0x10] sm:$0xf] %vm18, %v35
    %v38 = vld [vmem:[#allocation2] sm:$0xff]
    %v39 = vld [vmem:[#allocation2 + $0x8] sm:$0xff]
    %v40 = vld [vmem:[#allocation2 + $0x10] sm:$0xff]
    %42 = vset.pattern.permute.xlu0 0
    %43 = vperm.xlu0 %42, %v23
    %v44 = vpop.permute.xlu0 %43
    %vm46 = vcmask 195584
    %v48 = vsel %vm46, %v22, 0
    %50 = vmatpush.msra.mxu0 0.0
    %51 = vmatpush.msra.mxu0 0.0
    %52 = vmatpush.msra.mxu0 0.0
    %53 = vmatpush.msra.mxu0 0.0
    %54 = vmatpush.msra.mxu0 0.0
    %55 = vmatpush.msra.mxu0 0.0
    %56 = vmatpush.msra.mxu0 0.0
    %57 = vmatpush.msra.mxu0 0.0
    %58 = vmatpush.msra.mxu0 0.0
    %59 = vmatpush.msra.mxu0 0.0
    %60 = vmatpush.msra.mxu0 0.0
    %61 = vmatpush.msra.mxu0 0.0
    %62 = vmatpush.msra.mxu0 0.0
    %63 = vmatpush.msra.mxu0 %v40
    %64 = vmatpush.msra.mxu0 %v39
    %65 = vmatpush.msra.mxu0 %v38
    %66 = vmatmul.f32.gmra.mxu0 %v48
    %v67 = vpop.f32.mrf.mxu0
    %v68 = vadd.f32 %v44, %v67
    %69 = vdwg.mxu0
    %vm70 = vcmask 130048
    %71 = vst.msk [vmem:[#allocation3] sm:$0xff] %vm70, %v68
    %s72 = scalar_lea.vmem %s0, 4
    %v73 = vld [vmem:[%s72] sm:$0xf]
    %74 = vst.msk [vmem:[#allocation2] sm:$0xf] %vm18, %v73
    %v75 = vld [vmem:[%s72] sm:$0xf]
    %77 = vrot.lane.b32.xlu0 %v75, 127
    %v78 = vpop.permute.xlu0 %77
    %80 = vst.msk [vmem:[#allocation2 + $0x8] sm:$0xf] %vm18, %v78
    %v81 = vld [vmem:[%s72] sm:$0xf]
    %83 = vrot.lane.b32.xlu0 %v81, 126
    %v84 = vpop.permute.xlu0 %83
    %86 = vst.msk [vmem:[#allocation2 + $0x10] sm:$0xf] %vm18, %v84
    %v87 = vld [vmem:[#allocation2] sm:$0xff]
    %v88 = vld [vmem:[#allocation2 + $0x8] sm:$0xff]
    %v89 = vld [vmem:[#allocation2 + $0x10] sm:$0xff]
    %90 = vmatpush.msra.mxu0 0.0
    %91 = vmatpush.msra.mxu0 0.0
    %92 = vmatpush.msra.mxu0 0.0
    %93 = vmatpush.msra.mxu0 0.0
    %94 = vmatpush.msra.mxu0 0.0
    %95 = vmatpush.msra.mxu0 0.0
    %96 = vmatpush.msra.mxu0 0.0
    %97 = vmatpush.msra.mxu0 0.0
    %98 = vmatpush.msra.mxu0 0.0
    %99 = vmatpush.msra.mxu0 0.0
    %100 = vmatpush.msra.mxu0 0.0
    %101 = vmatpush.msra.mxu0 0.0
    %102 = vmatpush.msra.mxu0 0.0
    %103 = vmatpush.msra.mxu0 %v89
    %104 = vmatpush.msra.mxu0 %v88
    %105 = vmatpush.msra.mxu0 %v87
    %106 = vmatmul.f32.gmra.mxu0 %v48
    %v107 = vpop.f32.mrf.mxu0
    %v108 = vadd.f32 %v44, %v107
    %109 = vdwg.mxu0
    %s110 = scalar_lea.vmem [#allocation3], 8
    %111 = vst.msk [vmem:[%s110] sm:$0xff] %vm70, %v108
    %p112 = scmp.eq.s32.totalorder 0, 0
    %p113 = scmp.eq.s32.totalorder 0, 0
    %p114 = pnand %p112, %p113
    %p115 = pneg %p114
    // Predicated region
    $region14: #{stream_conv1d_forward.1} parent=1 // pred_check
      _
    $region15: #{stream_conv1d_forward.1} parent=1 // pred_check_branch
      %117 = sbr.rel (%p114) target = $region17
    $region16: #{stream_conv1d_forward.1} parent=1 // pred_region
      %v118 = vld [vmem:[%s0] sm:$0xf]
      %120 = vrot.lane.b32.xlu0 %v118, 127
      %v121 = vpop.permute.xlu0 %120
      %vm123 = vcmask 134144
      %124 = vst.msk [vmem:[#allocation5] sm:$0xf] %vm123, %v121
      %v125 = vld [vmem:[%s72] sm:$0xf]
      %127 = vrot.lane.b32.xlu0 %v125, 127
      %v128 = vpop.permute.xlu0 %127
      %s130 = scalar_lea.vmem [#allocation5], 4
      %131 = vst.msk [vmem:[%s130] sm:$0xf] %vm123, %v128
    $region17: #{stream_conv1d_forward.1} parent=1 // pred_fallthru
      _
    // Predicated region
    $region18: #{stream_conv1d_forward.1} parent=1 // pred_check
      _
    $region19: #{stream_conv1d_forward.1} parent=1 // pred_check_branch
      %133 = sbr.rel (0) target = $region21
    $region20: #{stream_conv1d_forward.1} parent=1 // pred_region
      %135 = vsyncadd [#allocation4], 0
      %s136 = sshll.u32 [#allocation3], 4
      %s137 = int_to_ptr.vmem [resolvable:$true] %s136
      %s138 = sshll.u32 %s3, 4
      %s139 = int_to_ptr.hbm [resolvable:$true] %s138
      %144 = dma.vmem_to_hbm [thread:$0]  %s137, 256, %s139, [#allocation4], 128, 128, 8
    $region21: #{stream_conv1d_forward.1} parent=1 // pred_fallthru
      _
    // Predicated region
    $region22: #{stream_conv1d_forward.1} parent=1 // pred_check
      _
    $region23: #{stream_conv1d_forward.1} parent=1 // pred_check_branch
      %146 = sbr.rel (0) target = $region25
    $region24: #{stream_conv1d_forward.1} parent=1 // pred_region
      %148 = vsyncadd [#allocation6], 0
      %s149 = sshll.u32 [#allocation5], 4
      %s150 = int_to_ptr.vmem [resolvable:$true] %s149
      %s151 = sshll.u32 %s4, 4
      %s152 = int_to_ptr.hbm [resolvable:$true] %s151
      %157 = dma.vmem_to_hbm [thread:$0]  %s150, 128, %s152, [#allocation6], 64, 64, 4
    $region25: #{stream_conv1d_forward.1} parent=1 // pred_fallthru
      _
    // Predicated region
    $region26: #{stream_conv1d_forward.1} parent=1 // pred_check
      _
    $region27: #{stream_conv1d_forward.1} parent=1 // pred_check_branch
      %159 = sbr.rel (0) target = $region29
    $region28: #{stream_conv1d_forward.1} parent=1 // pred_region
      %161 = dma.done [#allocation4], 256
    $region29: #{stream_conv1d_forward.1} parent=1 // pred_fallthru
      _
    // Predicated region
    $region30: #{stream_conv1d_forward.1} parent=1 // pred_check
      _
    $region31: #{stream_conv1d_forward.1} parent=1 // pred_check_branch
      %163 = sbr.rel (0) target = $region33
    $region32: #{stream_conv1d_forward.1} parent=1 // pred_region
      %165 = dma.done [#allocation6], 128
    $region33: #{stream_conv1d_forward.1} parent=1 // pred_fallthru
      _
    %166 = vsyncpa [#allocation4], 1
    %167 = vsyncpa [#allocation6], 1

</llo_original>
